<compile_context>
chip_gen: v7x
topology: tpu7x:2x2x1
jax: 0.10.0
libtpu: 0.0.40
codegen_flags: <defaults>
</compile_context>

<pallas_src>
import jax
import jax.numpy as jnp
from jax.experimental import pallas as pl
from jax.experimental.pallas import tpu as pltpu


_NEG_BIG = -1.0e30  # effectively -inf for softmax masking, without inf arithmetic


def _round_up(x, m):
    return ((x + m - 1) // m) * m


def _pad_2d(x, rows, cols):
    r, c = x.shape
    if r == rows and c == cols:
        return x
    return jnp.pad(x, ((0, rows - r), (0, cols - c)))


# --------------------------------------------------------------------------- #
# Kernel
# --------------------------------------------------------------------------- #
def _label_attn_one(x_ref, wt_ref, w_ref, b_ref, o_ref):
    """score = x @ W^T + bias ; softmax over labels ; res = probs @ W."""
    x = x_ref[...]                                     # (tm, H_pad)  compute dtype
    # Native-orientation MXU matmul against the pre-transposed resident weight.
    score = jnp.dot(x, wt_ref[...],
                    preferred_element_type=jnp.float32)  # (tm, L_pad) f32
    # Additive label-padding bias (0 real / -1e30 padded): one broadcast add.
    score = score + b_ref[...]

    # Numerically stable softmax over the label axis, f32 accumulation.
    m = jnp.max(score, axis=-1, keepdims=True)
    e = jnp.exp(score - m)                             # in [0, 1]; padded cols -> 0
    denom = jnp.sum(e, axis=-1, keepdims=True)

    # Late normalization: matmul the un-normalized weights, scale the
    # (tm, H_pad) result instead of the (tm, L_pad) probabilities.
    res = jnp.dot(e.astype(w_ref.dtype), w_ref[...],
                  preferred_element_type=jnp.float32)  # (tm, H_pad) f32
    res = res * pl.reciprocal(denom, approx=True)      # EUP reciprocal
    o_ref[...] = res.astype(o_ref.dtype)


def _fused_kernel(xi_ref, xs_ref, wti_ref, wts_ref, wi_ref, ws_ref,
                  bi_ref, bs_ref, oi_ref, os_ref):
    _label_attn_one(xi_ref, wti_ref, wi_ref, bi_ref, oi_ref)
    _label_attn_one(xs_ref, wts_ref, ws_ref, bs_ref, os_ref)


# --------------------------------------------------------------------------- #
# Tiling / VMEM sizing
# --------------------------------------------------------------------------- #
def _choose_tm(n8, h_pad, l_max_pad, in_item, out_item):
    """Pick a row-tile size from the VMEM budget, forcing >=2 grid steps."""
    budget = 12 << 20                                   # I/O-buffer target, all gens
    per_row = 2 * 2 * h_pad * in_item                   # xi, xs (double-buffered)
    per_row += 2 * 2 * h_pad * out_item                 # oi, os (double-buffered)
    per_row += 2 * (3 * l_max_pad + h_pad) * 4          # f32 temporaries per stream
    tm = (budget // per_row) // 8 * 8
    tm = max(256, min(int(tm), 2048))
    # >= 2 grid steps: lets the "parallel" row axis span both v7x TensorCores
    # and gives the BlockSpec pipeline something to overlap.
    tm = min(tm, max(8, (n8 // 2) // 8 * 8))
    return int(max(8, min(tm, n8)))


def _vmem_footprint(tm, h_pad, li_pad, ls_pad, in_item, out_item, w_item):
    io = 2 * tm * h_pad * (2 * in_item + 2 * out_item)        # xi/xs/oi/os, 2 buffers
    weights = 2 * 2 * (li_pad + ls_pad) * h_pad * w_item      # W and W^T, 2 buffers
    bias = 2 * (li_pad + ls_pad) * 4
    temps = 2 * tm * (3 * max(li_pad, ls_pad) + h_pad) * 4    # f32 temporaries
    return io + weights + bias + temps


# --------------------------------------------------------------------------- #
# pallas_call wrapper
# --------------------------------------------------------------------------- #
def _fused_label_attention(xi, xs, wti, wts, wi, ws, bi, bs, *, tm, out_dtype):
    n_pad, h_pad = xi.shape
    li_pad = wi.shape[0]
    ls_pad = ws.shape[0]
    grid = (n_pad // tm,)

    footprint = _vmem_footprint(
        tm, h_pad, li_pad, ls_pad,
        jnp.dtype(xi.dtype).itemsize, jnp.dtype(out_dtype).itemsize,
        jnp.dtype(wi.dtype).itemsize)
    vmem_limit = min(max(int(1.5 * footprint), 24 << 20), 48 << 20)

    return pl.pallas_call(
        _fused_kernel,
        out_shape=(
            jax.ShapeDtypeStruct((n_pad, h_pad), out_dtype),
            jax.ShapeDtypeStruct((n_pad, h_pad), out_dtype),
        ),
        grid_spec=pltpu.PrefetchScalarGridSpec(
            num_scalar_prefetch=0,
            grid=grid,
            in_specs=[
                pl.BlockSpec((tm, h_pad), lambda i: (i, 0)),       # intent rows
                pl.BlockSpec((tm, h_pad), lambda i: (i, 0)),       # slot rows
                pl.BlockSpec((h_pad, li_pad), lambda i: (0, 0)),   # W_intent^T (resident)
                pl.BlockSpec((h_pad, ls_pad), lambda i: (0, 0)),   # W_slot^T   (resident)
                pl.BlockSpec((li_pad, h_pad), lambda i: (0, 0)),   # W_intent   (resident)
                pl.BlockSpec((ls_pad, h_pad), lambda i: (0, 0)),   # W_slot     (resident)
                pl.BlockSpec((1, li_pad), lambda i: (0, 0)),       # intent pad bias
                pl.BlockSpec((1, ls_pad), lambda i: (0, 0)),       # slot pad bias
            ],
            out_specs=[
                pl.BlockSpec((tm, h_pad), lambda i: (i, 0)),
                pl.BlockSpec((tm, h_pad), lambda i: (i, 0)),
            ],
        ),
        compiler_params=pltpu.CompilerParams(
            dimension_semantics=("parallel",),   # row axis shards across TCs (v7x)
            vmem_limit_bytes=vmem_limit,
        ),
    )(xi, xs, wti, wts, wi, ws, bi, bs)


def label_attention_forward(input_intent, input_slot, mask,
                            W_intent_emb, W_slot_emb, *,
                            compute_dtype=jnp.bfloat16, tm=None):
    """Mirrors Label_Attention.forward; `mask` is unused (as in the reference)."""
    del mask
    B, S, H = input_intent.shape
    n_intent, Hw_i = W_intent_emb.shape
    n_slot, Hw_s = W_slot_emb.shape
    assert H == Hw_i == Hw_s
    out_dtype = input_intent.dtype

    N = B * S
    H_pad = _round_up(H, 128)            # lane-dense hidden
    Li_pad = _round_up(n_intent, 128)    # lane-dense label axes
    Ls_pad = _round_up(n_slot, 128)

    in_item = jnp.dtype(compute_dtype).itemsize
    out_item = jnp.dtype(out_dtype).itemsize
    N8 = _round_up(N, 8)
    if tm is None:
        tm = _choose_tm(N8, H_pad, max(Li_pad, Ls_pad), in_item, out_item)
    tm = int(max(8, min(tm, N8)))
    N_pad = _round_up(N8, tm)            # trailing block reads only zero padding

    # Row streams: lane-dense, zero-padded, compute dtype (bf16 by default).
    xi = _pad_2d(input_intent.reshape(N, H), N_pad, H_pad).astype(compute_dtype)
    xs = _pad_2d(input_slot.reshape(N, H), N_pad, H_pad).astype(compute_dtype)

    # Weights: padded, compute dtype, plus a one-time transposed copy so the
    # score matmul runs in native MXU orientation (no per-step XLU transpose).
    wi = _pad_2d(W_intent_emb, Li_pad, H_pad).astype(compute_dtype)
    ws = _pad_2d(W_slot_emb, Ls_pad, H_pad).astype(compute_dtype)
    wti = jnp.transpose(wi)              # (H_pad, Li_pad)
    wts = jnp.transpose(ws)              # (H_pad, Ls_pad)

    # Resident additive pad-masks: 0 for real labels, -1e30 for padded ones.
    bi = jnp.where(jnp.arange(Li_pad) < n_intent, 0.0, _NEG_BIG
                   ).astype(jnp.float32).reshape(1, Li_pad)
    bs = jnp.where(jnp.arange(Ls_pad) < n_slot, 0.0, _NEG_BIG
                   ).astype(jnp.float32).reshape(1, Ls_pad)

    oi, os_ = _fused_label_attention(xi, xs, wti, wts, wi, ws, bi, bs,
                                     tm=tm, out_dtype=out_dtype)

    intent_res = oi[:N, :H].reshape(B, S, H)
    slot_res = os_[:N, :H].reshape(B, S, H)
    return intent_res, slot_res


# --------------------------------------------------------------------------- #
# Reference + test
# --------------------------------------------------------------------------- #
def _reference(input_intent, input_slot, W_intent_emb, W_slot_emb):
    intent_score = jnp.einsum("bsh,lh->bsl", input_intent, W_intent_emb)
    slot_score = jnp.einsum("bsh,lh->bsl", input_slot, W_slot_emb)
    intent_probs = jax.nn.softmax(intent_score, axis=-1)
    slot_probs = jax.nn.softmax(slot_score, axis=-1)
    return (jnp.einsum("bsl,lh->bsh", intent_probs, W_intent_emb),
            jnp.einsum("bsl,lh->bsh", slot_probs, W_slot_emb))


if __name__ == "__main__":
    B, S, H = 2, 8, 32
    N_INTENT, N_SLOT = 8, 16

    key = jax.random.PRNGKey(0)
    k1, k2, k3, k4 = jax.random.split(key, 4)

    # Deterministic synthetic parameters (nn.Embedding weights: (num_labels, H))
    W_intent_emb = jax.random.normal(k1, (N_INTENT, H), dtype=jnp.float32)
    W_slot_emb = jax.random.normal(k2, (N_SLOT, H), dtype=jnp.float32)

    input_intent = jax.random.normal(k3, (B, S, H), dtype=jnp.float32)
    input_slot = jax.random.normal(k4, (B, S, H), dtype=jnp.float32)
    mask = jnp.ones((B, S), dtype=jnp.float32)  # unused by the forward pass

    ref_intent, ref_slot = _reference(input_intent, input_slot,
                                      W_intent_emb, W_slot_emb)

    # 1) Production path: bf16 operands, f32 accumulation/softmax.
    intent_bf, slot_bf = label_attention_forward(
        input_intent, input_slot, mask, W_intent_emb, W_slot_emb,
        compute_dtype=jnp.bfloat16)
    jax.block_until_ready((intent_bf, slot_bf))
    assert jnp.allclose(intent_bf, ref_intent, atol=5e-2, rtol=5e-2)
    assert jnp.allclose(slot_bf, ref_slot, atol=5e-2, rtol=5e-2)

    # 2) Full-precision path: tight check of the kernel logic itself
    #    (tolerance covers the EUP approximate reciprocal in the softmax).
    intent_f32, slot_f32 = label_attention_forward(
        input_intent, input_slot, mask, W_intent_emb, W_slot_emb,
        compute_dtype=jnp.float32)
    jax.block_until_ready((intent_f32, slot_f32))
    assert jnp.allclose(intent_f32, ref_intent, atol=1e-2, rtol=1e-2)
    assert jnp.allclose(slot_f32, ref_slot, atol=1e-2, rtol=1e-2)

    print("KERNEL_OK")
</pallas_src>

<mosaic_0001>
module attributes {stable_mosaic.version = 11 : i64} {
  func.func @_fused_kernel(%arg0: i32, %arg1: memref<8x128xbf16, #tpu.memory_space<vmem>>, %arg2: memref<8x128xbf16, #tpu.memory_space<vmem>>, %arg3: memref<128x128xbf16, #tpu.memory_space<vmem>>, %arg4: memref<128x128xbf16, #tpu.memory_space<vmem>>, %arg5: memref<128x128xbf16, #tpu.memory_space<vmem>>, %arg6: memref<128x128xbf16, #tpu.memory_space<vmem>>, %arg7: memref<1x128xf32, #tpu.memory_space<vmem>>, %arg8: memref<1x128xf32, #tpu.memory_space<vmem>>, %arg9: memref<8x128xf32, #tpu.memory_space<vmem>>, %arg10: memref<8x128xf32, #tpu.memory_space<vmem>>) attributes {dimension_semantics = [#tpu.dimension_semantics<parallel>], iteration_bounds = array<i64: 2>, scalar_prefetch = 0 : i64, scratch_operands = 0 : i64, tpu.core_type = #tpu.core_type<tc>, window_params = [{transform_indices = @transform_0, window_bounds = array<i64: 8, 128>}, {transform_indices = @transform_1, window_bounds = array<i64: 8, 128>}, {pipeline_mode = #tpu.pipeline_mode<synchronous>, transform_indices = @transform_2, window_bounds = array<i64: 128, 128>}, {pipeline_mode = #tpu.pipeline_mode<synchronous>, transform_indices = @transform_3, window_bounds = array<i64: 128, 128>}, {pipeline_mode = #tpu.pipeline_mode<synchronous>, transform_indices = @transform_4, window_bounds = array<i64: 128, 128>}, {pipeline_mode = #tpu.pipeline_mode<synchronous>, transform_indices = @transform_5, window_bounds = array<i64: 128, 128>}, {pipeline_mode = #tpu.pipeline_mode<synchronous>, transform_indices = @transform_6, window_bounds = array<i64: 1, 128>}, {pipeline_mode = #tpu.pipeline_mode<synchronous>, transform_indices = @transform_7, window_bounds = array<i64: 1, 128>}, {transform_indices = @transform_8, window_bounds = array<i64: 8, 128>}, {transform_indices = @transform_9, window_bounds = array<i64: 8, 128>}]} {
    %c0 = arith.constant 0 : index
    %c0_0 = arith.constant 0 : index
    %0 = vector.load %arg1[%c0, %c0_0] : memref<8x128xbf16, #tpu.memory_space<vmem>>, vector<8x128xbf16>
    %c0_1 = arith.constant 0 : index
    %c0_2 = arith.constant 0 : index
    %1 = vector.load %arg3[%c0_1, %c0_2] : memref<128x128xbf16, #tpu.memory_space<vmem>>, vector<128x128xbf16>
    %cst = arith.constant dense<0.000000e+00> : vector<8x128xf32>
    %2 = tpu.matmul %0, %1, %cst {dimension_numbers = #tpu.dot_dimension_numbers<[1], [0], [0], [1], [0, 0, 1, 1], [], []>} : vector<8x128xbf16>, vector<128x128xbf16>, vector<8x128xf32> -> vector<8x128xf32>
    %c0_3 = arith.constant 0 : index
    %c0_4 = arith.constant 0 : index
    %3 = vector.load %arg7[%c0_3, %c0_4] : memref<1x128xf32, #tpu.memory_space<vmem>>, vector<1x128xf32>
    %4 = vector.broadcast %3 : vector<1x128xf32> to vector<8x128xf32>
    %5 = arith.addf %2, %4 : vector<8x128xf32>
    %cst_5 = arith.constant dense<0xFF800000> : vector<8xf32>
    %6 = vector.multi_reduction <maximumf>, %5, %cst_5 [1] : vector<8x128xf32> to vector<8xf32>
    %7 = vector.shape_cast %6 : vector<8xf32> to vector<8x1xf32>
    %8 = vector.broadcast %7 : vector<8x1xf32> to vector<8x128xf32>
    %9 = arith.subf %5, %8 : vector<8x128xf32>
    %10 = math.exp %9 : vector<8x128xf32>
    %cst_6 = arith.constant dense<0.000000e+00> : vector<8xf32>
    %11 = vector.multi_reduction <add>, %10, %cst_6 [1] : vector<8x128xf32> to vector<8xf32>
    %12 = vector.shape_cast %11 : vector<8xf32> to vector<8x1xf32>
    %13 = arith.truncf %10 : vector<8x128xf32> to vector<8x128xbf16>
    %c0_7 = arith.constant 0 : index
    %c0_8 = arith.constant 0 : index
    %14 = vector.load %arg5[%c0_7, %c0_8] : memref<128x128xbf16, #tpu.memory_space<vmem>>, vector<128x128xbf16>
    %cst_9 = arith.constant dense<0.000000e+00> : vector<8x128xf32>
    %15 = tpu.matmul %13, %14, %cst_9 {dimension_numbers = #tpu.dot_dimension_numbers<[1], [0], [0], [1], [0, 0, 1, 1], [], []>} : vector<8x128xbf16>, vector<128x128xbf16>, vector<8x128xf32> -> vector<8x128xf32>
    %16 = tpu.reciprocal %12 {approx = true} : vector<8x1xf32> -> vector<8x1xf32>
    %17 = vector.broadcast %16 : vector<8x1xf32> to vector<8x128xf32>
    %18 = arith.mulf %15, %17 : vector<8x128xf32>
    %c0_10 = arith.constant 0 : index
    %c0_11 = arith.constant 0 : index
    %19 = vector.load %arg9[%c0_10, %c0_11] : memref<8x128xf32, #tpu.memory_space<vmem>>, vector<8x128xf32>
    tpu.vector_store %arg9[%c0_10, %c0_11], %18 {strides = array<i32>} : memref<8x128xf32, #tpu.memory_space<vmem>>, vector<8x128xf32>,
    %c0_12 = arith.constant 0 : index
    %c0_13 = arith.constant 0 : index
    %20 = vector.load %arg2[%c0_12, %c0_13] : memref<8x128xbf16, #tpu.memory_space<vmem>>, vector<8x128xbf16>
    %c0_14 = arith.constant 0 : index
    %c0_15 = arith.constant 0 : index
    %21 = vector.load %arg4[%c0_14, %c0_15] : memref<128x128xbf16, #tpu.memory_space<vmem>>, vector<128x128xbf16>
    %cst_16 = arith.constant dense<0.000000e+00> : vector<8x128xf32>
    %22 = tpu.matmul %20, %21, %cst_16 {dimension_numbers = #tpu.dot_dimension_numbers<[1], [0], [0], [1], [0, 0, 1, 1], [], []>} : vector<8x128xbf16>, vector<128x128xbf16>, vector<8x128xf32> -> vector<8x128xf32>
    %c0_17 = arith.constant 0 : index
    %c0_18 = arith.constant 0 : index
    %23 = vector.load %arg8[%c0_17, %c0_18] : memref<1x128xf32, #tpu.memory_space<vmem>>, vector<1x128xf32>
    %24 = vector.broadcast %23 : vector<1x128xf32> to vector<8x128xf32>
    %25 = arith.addf %22, %24 : vector<8x128xf32>
    %cst_19 = arith.constant dense<0xFF800000> : vector<8xf32>
    %26 = vector.multi_reduction <maximumf>, %25, %cst_19 [1] : vector<8x128xf32> to vector<8xf32>
    %27 = vector.shape_cast %26 : vector<8xf32> to vector<8x1xf32>
    %28 = vector.broadcast %27 : vector<8x1xf32> to vector<8x128xf32>
    %29 = arith.subf %25, %28 : vector<8x128xf32>
    %30 = math.exp %29 : vector<8x128xf32>
    %cst_20 = arith.constant dense<0.000000e+00> : vector<8xf32>
    %31 = vector.multi_reduction <add>, %30, %cst_20 [1] : vector<8x128xf32> to vector<8xf32>
    %32 = vector.shape_cast %31 : vector<8xf32> to vector<8x1xf32>
    %33 = arith.truncf %30 : vector<8x128xf32> to vector<8x128xbf16>
    %c0_21 = arith.constant 0 : index
    %c0_22 = arith.constant 0 : index
    %34 = vector.load %arg6[%c0_21, %c0_22] : memref<128x128xbf16, #tpu.memory_space<vmem>>, vector<128x128xbf16>
    %cst_23 = arith.constant dense<0.000000e+00> : vector<8x128xf32>
    %35 = tpu.matmul %33, %34, %cst_23 {dimension_numbers = #tpu.dot_dimension_numbers<[1], [0], [0], [1], [0, 0, 1, 1], [], []>} : vector<8x128xbf16>, vector<128x128xbf16>, vector<8x128xf32> -> vector<8x128xf32>
    %36 = tpu.reciprocal %32 {approx = true} : vector<8x1xf32> -> vector<8x1xf32>
    %37 = vector.broadcast %36 : vector<8x1xf32> to vector<8x128xf32>
    %38 = arith.mulf %35, %37 : vector<8x128xf32>
    %c0_24 = arith.constant 0 : index
    %c0_25 = arith.constant 0 : index
    %39 = vector.load %arg10[%c0_24, %c0_25] : memref<8x128xf32, #tpu.memory_space<vmem>>, vector<8x128xf32>
    tpu.vector_store %arg10[%c0_24, %c0_25], %38 {strides = array<i32>} : memref<8x128xf32, #tpu.memory_space<vmem>>, vector<8x128xf32>,
    return
  }
  func.func @transform_0(%arg0: i32) -> (i32, i32) {
    %c0_i32 = arith.constant 0 : i32
    %c0_i32_0 = arith.constant 0 : i32
    return %arg0, %c0_i32 : i32, i32
  }
  func.func @transform_1(%arg0: i32) -> (i32, i32) {
    %c0_i32 = arith.constant 0 : i32
    %c0_i32_0 = arith.constant 0 : i32
    return %arg0, %c0_i32 : i32, i32
  }
  func.func @transform_2(%arg0: i32) -> (i32, i32) {
    %c0_i32 = arith.constant 0 : i32
    %c0_i32_0 = arith.constant 0 : i32
    %c0_i32_1 = arith.constant 0 : i32
    return %c0_i32, %c0_i32_0 : i32, i32
  }
  func.func @transform_3(%arg0: i32) -> (i32, i32) {
    %c0_i32 = arith.constant 0 : i32
    %c0_i32_0 = arith.constant 0 : i32
    %c0_i32_1 = arith.constant 0 : i32
    return %c0_i32, %c0_i32_0 : i32, i32
  }
  func.func @transform_4(%arg0: i32) -> (i32, i32) {
    %c0_i32 = arith.constant 0 : i32
    %c0_i32_0 = arith.constant 0 : i32
    %c0_i32_1 = arith.constant 0 : i32
    return %c0_i32, %c0_i32_0 : i32, i32
  }
  func.func @transform_5(%arg0: i32) -> (i32, i32) {
    %c0_i32 = arith.constant 0 : i32
    %c0_i32_0 = arith.constant 0 : i32
    %c0_i32_1 = arith.constant 0 : i32
    return %c0_i32, %c0_i32_0 : i32, i32
  }
  func.func @transform_6(%arg0: i32) -> (i32, i32) {
    %c0_i32 = arith.constant 0 : i32
    %c0_i32_0 = arith.constant 0 : i32
    %c0_i32_1 = arith.constant 0 : i32
    return %c0_i32, %c0_i32_0 : i32, i32
  }
  func.func @transform_7(%arg0: i32) -> (i32, i32) {
    %c0_i32 = arith.constant 0 : i32
    %c0_i32_0 = arith.constant 0 : i32
    %c0_i32_1 = arith.constant 0 : i32
    return %c0_i32, %c0_i32_0 : i32, i32
  }
  func.func @transform_8(%arg0: i32) -> (i32, i32) {
    %c0_i32 = arith.constant 0 : i32
    %c0_i32_0 = arith.constant 0 : i32
    return %arg0, %c0_i32 : i32, i32
  }
  func.func @transform_9(%arg0: i32) -> (i32, i32) {
    %c0_i32 = arith.constant 0 : i32
    %c0_i32_0 = arith.constant 0 : i32
    return %arg0, %c0_i32 : i32, i32
  }
}

</mosaic_0001>

<llo_original>
// kernel: tpu_custom_call.1
$region0: #{tpu_custom_call.1}
  #allocation0 [shape = 'u32[]', space=smem, size = 0x4, offset = 0x4, fixed_abs, tag = 'smem constant byte address 0x4 - core index']
  #allocation1 [shape = 'u32[144,128]{1,0:T(1,128)}', space=vmem, size = 0x12000, scoped, tag = 'internal scratch']
  %s0 = inlined_call_operand.hbm [shape: bf16[16,128], index: 0, kind: input, shape index: {}]
  %s1 = inlined_call_operand.hbm [shape: bf16[16,128], index: 1, kind: input, shape index: {}]
  %s2 = inlined_call_operand.hbm [shape: bf16[128,128], index: 2, kind: input, shape index: {}]
  %s3 = inlined_call_operand.hbm [shape: bf16[128,128], index: 3, kind: input, shape index: {}]
  %s4 = inlined_call_operand.hbm [shape: bf16[128,128], index: 4, kind: input, shape index: {}]
  %s5 = inlined_call_operand.hbm [shape: bf16[128,128], index: 5, kind: input, shape index: {}]
  %s6 = inlined_call_operand.vmem [shape: f32[1,128], index: 6, kind: input, shape index: {}]
  %s7 = inlined_call_operand.vmem [shape: f32[1,128], index: 7, kind: input, shape index: {}]
  %s8 = inlined_call_operand.hbm [shape: f32[16,128], index: 8, kind: output, shape index: {0}]
  %s9 = inlined_call_operand.hbm [shape: f32[16,128], index: 9, kind: output, shape index: {1}]
  %10 = xla_tuple %s8, %s9
  %s11 = sld [smem:[#allocation0]]
  $region97: #{tpu_custom_call.1} parent=0
    _
  %s13 = ssub.s32 1, %s11
  %s14 = scalar_select 0, %s13, %s11
  $region1: #{tpu_custom_call.1} parent=0
    #allocation2 [shape = 'u8[4096]{0}', space=vmem, size = 0x1000, scoped, tag = 'input window, operand 0']
    #allocation3 [shape = 's32[2]{0}', space=sflag, size = 0x8, scoped, tag = 'scoped memory for tpu_custom_call.1']
    #allocation4 [shape = 's32[2]{0}', space=sflag, size = 0x8, scoped, tag = 'scoped memory for tpu_custom_call.1']
    #allocation5 [shape = 'u8[4096]{0}', space=vmem, size = 0x1000, scoped, tag = 'input window, operand 1']
    #allocation6 [shape = 's32[2]{0}', space=sflag, size = 0x8, scoped, tag = 'scoped memory for tpu_custom_call.1']
    #allocation7 [shape = 'u8[32768]{0}', space=vmem, size = 0x8000, scoped, tag = 'input window, operand 2, single buffered']
    #allocation8 [shape = 'u8[32768]{0}', space=vmem, size = 0x8000, scoped, tag = 'input window, operand 3, single buffered']
    #allocation9 [shape = 's32[1]{0}', space=sflag, size = 0x4, scoped, tag = 'scoped memory for tpu_custom_call.1']
    #allocation10 [shape = 'u8[32768]{0}', space=vmem, size = 0x8000, scoped, tag = 'input window, operand 4, single buffered']
    #allocation11 [shape = 'u8[32768]{0}', space=vmem, size = 0x8000, scoped, tag = 'input window, operand 5, single buffered']
    #allocation12 [shape = 's32[1]{0}', space=sflag, size = 0x4, scoped, tag = 'scoped memory for tpu_custom_call.1']
    #allocation13 [shape = 'u8[8192]{0}', space=vmem, size = 0x2000, scoped, tag = 'output window, operand 0']
    #allocation14 [shape = 'u8[8192]{0}', space=vmem, size = 0x2000, scoped, tag = 'output window, operand 1']
    #allocation15 [shape = 's32[2]{0}', space=sflag, size = 0x8, scoped, tag = 'scoped memory for tpu_custom_call.1']
    %15 = vsyncpa [#allocation3], 0
    %s16 = scalar_lea.sflag [#allocation3], 1
    %17 = vsyncpa %s16, 0
    %18 = vsyncpa [#allocation6], 0
    %s19 = scalar_lea.sflag [#allocation6], 1
    %20 = vsyncpa %s19, 0
    %21 = vsyncpa [#allocation9], 0
    %22 = vsyncpa [#allocation12], 0
    %23 = vsyncpa [#allocation4], 0
    %s24 = scalar_lea.sflag [#allocation4], 1
    %25 = vsyncpa %s24, 0
    %26 = vsyncpa [#allocation15], 0
    %s27 = scalar_lea.sflag [#allocation15], 1
    %28 = vsyncpa %s27, 0
    loop: start=0, step=1, limit=4
    $region2: #{tpu_custom_call.1} parent=1 // loop_pre_header
      _
    $region3: #{tpu_custom_call.1} parent=1 // loop_header
      %s30 = sphi 0, %s34
      %p31 = scmp.ge.s32.totalorder %s30, 4
      %s40 = sphi 0, %s42
      %s43 = sphi 0, %s40
      %s44 = sphi 0, %s43
      %s60 = sphi 0, %s44
      %s66 = sphi 0, %s68
      %s69 = sphi 0, %s66
      %s70 = sphi 0, %s69
      %s86 = sphi 0, %s70
      %s90 = sphi 0, %s90
      %s92 = sphi 0, %s90
      %s93 = sphi 0, %s92
      %s107 = sphi 0, %s93
      %s111 = sphi 0, %s111
      %s113 = sphi 0, %s111
      %s114 = sphi 0, %s113
      %s128 = sphi 0, %s114
      %s132 = sphi 0, %s132
      %s134 = sphi 0, %s132
      %s135 = sphi 0, %s134
      %s149 = sphi 0, %s135
      %s153 = sphi 0, %s153
      %s155 = sphi 0, %s153
      %s156 = sphi 0, %s155
      %s170 = sphi 0, %s156
      %s174 = sphi 0, %s174
      %s176 = sphi 0, %s174
      %s177 = sphi 0, %s176
      %s191 = sphi 0, %s177
      %s195 = sphi 0, %s195
      %s197 = sphi 0, %s195
      %s198 = sphi 0, %s197
      %s212 = sphi 0, %s198
      %s218 = sphi 0, %s220
      %s221 = sphi 0, %s218
      %s222 = sphi 0, %s221
      %s238 = sphi 0, %s222
      %s244 = sphi 0, %s246
      %s247 = sphi 0, %s244
      %s248 = sphi 0, %s247
      %s264 = sphi 0, %s248
    $region4: #{tpu_custom_call.1} parent=1 // loop_header_branch
      %33 = sbr.rel (%p31) target = $region8
    $region5: #{tpu_custom_call.1} parent=1 // loop_body
      %s35 = ssub.s32 %s30, 1
      %s36 = ssub.s32 %s30, 2
      %s37 = sadd.s32 %s30, 1
      %s38 = ssub.s32 %s30, %s37
      %p39 = scmp.eq.s32.totalorder %s38, 0
      %s41 = sadd.s32 %s40, 1
      %s42 = scalar_select %p39, %s40, %s41
      %p45 = pneg %p39
      %p46 = scmp.eq.s32.totalorder %s30, 1
      %p47 = por %p45, %p46
      %p48 = scmp.ne.s32.totalorder %s40, %s43
      %p49 = scmp.eq.s32.totalorder %s30, 0
      %p50 = por %p48, %p49
      %p51 = scmp.ne.s32.totalorder %s40, %s43
      %p52 = scmp.eq.s32.totalorder %s35, 1
      %p53 = por %p51, %p52
      %p54 = scmp.ne.s32.totalorder %s43, %s44
      %p55 = scmp.eq.s32.totalorder %s35, 0
      %p56 = por %p54, %p55
      %p57 = scmp.ne.s32.totalorder %s43, %s44
      %p58 = scmp.eq.s32.totalorder %s36, 1
      %p59 = por %p57, %p58
      %p61 = scmp.ne.s32.totalorder %s44, %s60
      %p62 = scmp.eq.s32.totalorder %s36, 0
      %p63 = por %p61, %p62
      %s64 = ssub.s32 %s30, %s37
      %p65 = scmp.eq.s32.totalorder %s64, 0
      %s67 = sadd.s32 %s66, 1
      %s68 = scalar_select %p65, %s66, %s67
      %p71 = pneg %p65
      %p72 = scmp.eq.s32.totalorder %s30, 1
      %p73 = por %p71, %p72
      %p74 = scmp.ne.s32.totalorder %s66, %s69
      %p75 = scmp.eq.s32.totalorder %s30, 0
      %p76 = por %p74, %p75
      %p77 = scmp.ne.s32.totalorder %s66, %s69
      %p78 = scmp.eq.s32.totalorder %s35, 1
      %p79 = por %p77, %p78
      %p80 = scmp.ne.s32.totalorder %s69, %s70
      %p81 = scmp.eq.s32.totalorder %s35, 0
      %p82 = por %p80, %p81
      %p83 = scmp.ne.s32.totalorder %s69, %s70
      %p84 = scmp.eq.s32.totalorder %s36, 1
      %p85 = por %p83, %p84
      %p87 = scmp.ne.s32.totalorder %s70, %s86
      %p88 = scmp.eq.s32.totalorder %s36, 0
      %p89 = por %p87, %p88
      %s91 = sadd.s32 %s90, 1
      %p94 = scmp.eq.s32.totalorder %s30, 1
      %p95 = scmp.ne.s32.totalorder %s90, %s92
      %p96 = scmp.eq.s32.totalorder %s30, 0
      %p97 = por %p95, %p96
      %p98 = scmp.ne.s32.totalorder %s90, %s92
      %p99 = scmp.eq.s32.totalorder %s35, 1
      %p100 = por %p98, %p99
      %p101 = scmp.ne.s32.totalorder %s92, %s93
      %p102 = scmp.eq.s32.totalorder %s35, 0
      %p103 = por %p101, %p102
      %p104 = scmp.ne.s32.totalorder %s92, %s93
      %p105 = scmp.eq.s32.totalorder %s36, 1
      %p106 = por %p104, %p105
      %p108 = scmp.ne.s32.totalorder %s93, %s107
      %p109 = scmp.eq.s32.totalorder %s36, 0
      %p110 = por %p108, %p109
      %s112 = sadd.s32 %s111, 1
      %p115 = scmp.eq.s32.totalorder %s30, 1
      %p116 = scmp.ne.s32.totalorder %s111, %s113
      %p117 = scmp.eq.s32.totalorder %s30, 0
      %p118 = por %p116, %p117
      %p119 = scmp.ne.s32.totalorder %s111, %s113
      %p120 = scmp.eq.s32.totalorder %s35, 1
      %p121 = por %p119, %p120
      %p122 = scmp.ne.s32.totalorder %s113, %s114
      %p123 = scmp.eq.s32.totalorder %s35, 0
      %p124 = por %p122, %p123
      %p125 = scmp.ne.s32.totalorder %s113, %s114
      %p126 = scmp.eq.s32.totalorder %s36, 1
      %p127 = por %p125, %p126
      %p129 = scmp.ne.s32.totalorder %s114, %s128
      %p130 = scmp.eq.s32.totalorder %s36, 0
      %p131 = por %p129, %p130
      %s133 = sadd.s32 %s132, 1
      %p136 = scmp.eq.s32.totalorder %s30, 1
      %p137 = scmp.ne.s32.totalorder %s132, %s134
      %p138 = scmp.eq.s32.totalorder %s30, 0
      %p139 = por %p137, %p138
      %p140 = scmp.ne.s32.totalorder %s132, %s134
      %p141 = scmp.eq.s32.totalorder %s35, 1
      %p142 = por %p140, %p141
      %p143 = scmp.ne.s32.totalorder %s134, %s135
      %p144 = scmp.eq.s32.totalorder %s35, 0
      %p145 = por %p143, %p144
      %p146 = scmp.ne.s32.totalorder %s134, %s135
      %p147 = scmp.eq.s32.totalorder %s36, 1
      %p148 = por %p146, %p147
      %p150 = scmp.ne.s32.totalorder %s135, %s149
      %p151 = scmp.eq.s32.totalorder %s36, 0
      %p152 = por %p150, %p151
      %s154 = sadd.s32 %s153, 1
      %p157 = scmp.eq.s32.totalorder %s30, 1
      %p158 = scmp.ne.s32.totalorder %s153, %s155
      %p159 = scmp.eq.s32.totalorder %s30, 0
      %p160 = por %p158, %p159
      %p161 = scmp.ne.s32.totalorder %s153, %s155
      %p162 = scmp.eq.s32.totalorder %s35, 1
      %p163 = por %p161, %p162
      %p164 = scmp.ne.s32.totalorder %s155, %s156
      %p165 = scmp.eq.s32.totalorder %s35, 0
      %p166 = por %p164, %p165
      %p167 = scmp.ne.s32.totalorder %s155, %s156
      %p168 = scmp.eq.s32.totalorder %s36, 1
      %p169 = por %p167, %p168
      %p171 = scmp.ne.s32.totalorder %s156, %s170
      %p172 = scmp.eq.s32.totalorder %s36, 0
      %p173 = por %p171, %p172
      %s175 = sadd.s32 %s174, 1
      %p178 = scmp.eq.s32.totalorder %s30, 1
      %p179 = scmp.ne.s32.totalorder %s174, %s176
      %p180 = scmp.eq.s32.totalorder %s30, 0
      %p181 = por %p179, %p180
      %p182 = scmp.ne.s32.totalorder %s174, %s176
      %p183 = scmp.eq.s32.totalorder %s35, 1
      %p184 = por %p182, %p183
      %p185 = scmp.ne.s32.totalorder %s176, %s177
      %p186 = scmp.eq.s32.totalorder %s35, 0
      %p187 = por %p185, %p186
      %p188 = scmp.ne.s32.totalorder %s176, %s177
      %p189 = scmp.eq.s32.totalorder %s36, 1
      %p190 = por %p188, %p189
      %p192 = scmp.ne.s32.totalorder %s177, %s191
      %p193 = scmp.eq.s32.totalorder %s36, 0
      %p194 = por %p192, %p193
      %s196 = sadd.s32 %s195, 1
      %p199 = scmp.eq.s32.totalorder %s30, 1
      %p200 = scmp.ne.s32.totalorder %s195, %s197
      %p201 = scmp.eq.s32.totalorder %s30, 0
      %p202 = por %p200, %p201
      %p203 = scmp.ne.s32.totalorder %s195, %s197
      %p204 = scmp.eq.s32.totalorder %s35, 1
      %p205 = por %p203, %p204
      %p206 = scmp.ne.s32.totalorder %s197, %s198
      %p207 = scmp.eq.s32.totalorder %s35, 0
      %p208 = por %p206, %p207
      %p209 = scmp.ne.s32.totalorder %s197, %s198
      %p210 = scmp.eq.s32.totalorder %s36, 1
      %p211 = por %p209, %p210
      %p213 = scmp.ne.s32.totalorder %s198, %s212
      %p214 = scmp.eq.s32.totalorder %s36, 0
      %p215 = por %p213, %p214
      %s216 = ssub.s32 %s30, %s37
      %p217 = scmp.eq.s32.totalorder %s216, 0
      %s219 = sadd.s32 %s218, 1
      %s220 = scalar_select %p217, %s218, %s219
      %p223 = pneg %p217
      %p224 = scmp.eq.s32.totalorder %s30, 1
      %p225 = por %p223, %p224
      %p226 = scmp.ne.s32.totalorder %s218, %s221
      %p227 = scmp.eq.s32.totalorder %s30, 0
      %p228 = por %p226, %p227
      %p229 = scmp.ne.s32.totalorder %s218, %s221
      %p230 = scmp.eq.s32.totalorder %s35, 1
      %p231 = por %p229, %p230
      %p232 = scmp.ne.s32.totalorder %s221, %s222
      %p233 = scmp.eq.s32.totalorder %s35, 0
      %p234 = por %p232, %p233
      %p235 = scmp.ne.s32.totalorder %s221, %s222
      %p236 = scmp.eq.s32.totalorder %s36, 1
      %p237 = por %p235, %p236
      %p239 = scmp.ne.s32.totalorder %s222, %s238
      %p240 = scmp.eq.s32.totalorder %s36, 0
      %p241 = por %p239, %p240
      %s242 = ssub.s32 %s30, %s37
      %p243 = scmp.eq.s32.totalorder %s242, 0
      %s245 = sadd.s32 %s244, 1
      %s246 = scalar_select %p243, %s244, %s245
      %p249 = pneg %p243
      %p250 = scmp.eq.s32.totalorder %s30, 1
      %p251 = por %p249, %p250
      %p252 = scmp.ne.s32.totalorder %s244, %s247
      %p253 = scmp.eq.s32.totalorder %s30, 0
      %p254 = por %p252, %p253
      %p255 = scmp.ne.s32.totalorder %s244, %s247
      %p256 = scmp.eq.s32.totalorder %s35, 1
      %p257 = por %p255, %p256
      %p258 = scmp.ne.s32.totalorder %s247, %s248
      %p259 = scmp.eq.s32.totalorder %s35, 0
      %p260 = por %p258, %p259
      %p261 = scmp.ne.s32.totalorder %s247, %s248
      %p262 = scmp.eq.s32.totalorder %s36, 1
      %p263 = por %p261, %p262
      %p265 = scmp.ne.s32.totalorder %s248, %s264
      %p266 = scmp.eq.s32.totalorder %s36, 0
      %p267 = por %p265, %p266
      %p268 = scmp.le.s32.totalorder 1, %s30
      %p269 = scmp.lt.s32.totalorder %s30, 3
      %p270 = pnand %p268, %p269
      %p271 = pneg %p270
      // Predicated region
      $region9: #{tpu_custom_call.1} parent=5 // pred_check
        _
      $region10: #{tpu_custom_call.1} parent=5 // pred_check_branch
        %273 = sbr.rel (%p270) target = $region12
      $region11: #{tpu_custom_call.1} parent=5 // pred_region
        %s274 = ssub.s32 %s30, 1
        // Predicated region
        $region13: #{tpu_custom_call.1} parent=11 // pred_check
          %p275 = pneg %p103
        $region14: #{tpu_custom_call.1} parent=11 // pred_check_branch
          %277 = sbr.rel (%p275) target = $region16
        $region15: #{tpu_custom_call.1} parent=11 // pred_region
          %s279 = ssub.s32 1024, 1024
          %280 = vsyncadd [#allocation6], %s279
          %s281 = sshll.u32 [#allocation7], 4
          %s282 = int_to_ptr.vmem [resolvable:$true] %s281
          %287 = dma.hbm_to_vmem [thread:$0]  %s2, 1024, %s282, [#allocation6], 64, 64, 4
        $region16: #{tpu_custom_call.1} parent=11 // pred_fallthru
          _
        // Predicated region
        $region17: #{tpu_custom_call.1} parent=11 // pred_check
          %p288 = pneg %p124
        $region18: #{tpu_custom_call.1} parent=11 // pred_check_branch
          %290 = sbr.rel (%p288) target = $region20
        $region19: #{tpu_custom_call.1} parent=11 // pred_region
          %s292 = ssub.s32 1024, 1024
          %293 = vsyncadd [#allocation9], %s292
          %s294 = sshll.u32 [#allocation8], 4
          %s295 = int_to_ptr.vmem [resolvable:$true] %s294
          %300 = dma.hbm_to_vmem [thread:$0]  %s3, 1024, %s295, [#allocation9], 64, 64, 4
        $region20: #{tpu_custom_call.1} parent=11 // pred_fallthru
          _
        // Predicated region
        $region21: #{tpu_custom_call.1} parent=11 // pred_check
          %p301 = pneg %p145
        $region22: #{tpu_custom_call.1} parent=11 // pred_check_branch
          %303 = sbr.rel (%p301) target = $region24
        $region23: #{tpu_custom_call.1} parent=11 // pred_region
          %s305 = ssub.s32 1024, 1024
          %306 = vsyncadd [#allocation9], %s305
          %s307 = sshll.u32 [#allocation10], 4
          %s308 = int_to_ptr.vmem [resolvable:$true] %s307
          %313 = dma.hbm_to_vmem [thread:$0]  %s4, 1024, %s308, [#allocation9], 64, 64, 4
        $region24: #{tpu_custom_call.1} parent=11 // pred_fallthru
          _
        // Predicated region
        $region25: #{tpu_custom_call.1} parent=11 // pred_check
          %p314 = pneg %p166
        $region26: #{tpu_custom_call.1} parent=11 // pred_check_branch
          %316 = sbr.rel (%p314) target = $region28
        $region27: #{tpu_custom_call.1} parent=11 // pred_region
          %s318 = ssub.s32 1024, 1024
          %319 = vsyncadd [#allocation12], %s318
          %s320 = sshll.u32 [#allocation11], 4
          %s321 = int_to_ptr.vmem [resolvable:$true] %s320
          %326 = dma.hbm_to_vmem [thread:$0]  %s5, 1024, %s321, [#allocation12], 64, 64, 4
        $region28: #{tpu_custom_call.1} parent=11 // pred_fallthru
          _
        // Predicated region
        $region29: #{tpu_custom_call.1} parent=11 // pred_check
          %p327 = pneg %p187
        $region30: #{tpu_custom_call.1} parent=11 // pred_check_branch
          %329 = sbr.rel (%p327) target = $region32
        $region31: #{tpu_custom_call.1} parent=11 // pred_region
          _
        $region32: #{tpu_custom_call.1} parent=11 // pred_fallthru
          _
        // Predicated region
        $region33: #{tpu_custom_call.1} parent=11 // pred_check
          %p330 = pneg %p208
        $region34: #{tpu_custom_call.1} parent=11 // pred_check_branch
          %332 = sbr.rel (%p330) target = $region36
        $region35: #{tpu_custom_call.1} parent=11 // pred_region
          _
        $region36: #{tpu_custom_call.1} parent=11 // pred_fallthru
          _
      $region12: #{tpu_custom_call.1} parent=5 // pred_fallthru
        _
      %p333 = scmp.lt.s32.totalorder %s30, 2
      // Predicated region
      $region37: #{tpu_custom_call.1} parent=5 // pred_check
        %p334 = pneg %p333
      $region38: #{tpu_custom_call.1} parent=5 // pred_check_branch
        %336 = sbr.rel (%p334) target = $region40
      $region39: #{tpu_custom_call.1} parent=5 // pred_region
        // Predicated region
        $region41: #{tpu_custom_call.1} parent=39 // pred_check
          %p337 = pneg %p50
        $region42: #{tpu_custom_call.1} parent=39 // pred_check_branch
          %339 = sbr.rel (%p337) target = $region44
        $region43: #{tpu_custom_call.1} parent=39 // pred_region
          %s340 = sand.u32 %s40, 1
          %s341 = scalar_lea.sflag [#allocation3], %s340
          %s342 = sand.u32 %s40, 1
          %s343 = smul.addr %s342, 4
          %s344 = scalar_lea.vmem [#allocation2], %s343
          %s346 = ssub.s32 64, 64
          %347 = vsyncadd %s341, %s346
          %s348 = smul.addr %s30, 64
          %s349 = scalar_lea.hbm %s0, %s348
          %s351 = sshll.u32 %s344, 4
          %s352 = int_to_ptr.vmem [resolvable:$true] %s351
          %354 = dma.hbm_to_vmem [thread:$0]  %s349, 64, %s352, %s341
        $region44: #{tpu_custom_call.1} parent=39 // pred_fallthru
          _
        // Predicated region
        $region45: #{tpu_custom_call.1} parent=39 // pred_check
          %p355 = pneg %p76
        $region46: #{tpu_custom_call.1} parent=39 // pred_check_branch
          %357 = sbr.rel (%p355) target = $region48
        $region47: #{tpu_custom_call.1} parent=39 // pred_region
          %s358 = sand.u32 %s30, 1
          %s359 = scalar_lea.sflag [#allocation6], %s358
          %s360 = sand.u32 %s66, 1
          %s361 = smul.addr %s360, 4
          %s362 = scalar_lea.vmem [#allocation5], %s361
          %s364 = ssub.s32 64, 64
          %365 = vsyncadd %s359, %s364
          %s366 = smul.addr %s30, 64
          %s367 = scalar_lea.hbm %s1, %s366
          %s369 = sshll.u32 %s362, 4
          %s370 = int_to_ptr.vmem [resolvable:$true] %s369
          %372 = dma.hbm_to_vmem [thread:$0]  %s367, 64, %s370, %s359
        $region48: #{tpu_custom_call.1} parent=39 // pred_fallthru
          _
      $region40: #{tpu_custom_call.1} parent=5 // pred_fallthru
        _
      %p373 = scmp.le.s32.totalorder 1, %s30
      %p374 = scmp.lt.s32.totalorder %s30, 3
      %p375 = pnand %p373, %p374
      %p376 = pneg %p375
      // Predicated region
      $region49: #{tpu_custom_call.1} parent=5 // pred_check
        _
      $region50: #{tpu_custom_call.1} parent=5 // pred_check_branch
        %378 = sbr.rel (%p375) target = $region52
      $region51: #{tpu_custom_call.1} parent=5 // pred_region
        %s379 = ssub.s32 %s30, 1
        %s380 = sand.u32 %s43, 1
        %s381 = scalar_lea.sflag [#allocation3], %s380
        %s382 = sand.u32 %s43, 1
        %s383 = smul.addr %s382, 4
        %s384 = scalar_lea.vmem [#allocation2], %s383
        // Predicated region
        $region53: #{tpu_custom_call.1} parent=51 // pred_check
          %p385 = pneg %p56
        $region54: #{tpu_custom_call.1} parent=51 // pred_check_branch
          %387 = sbr.rel (%p385) target = $region56
        $region55: #{tpu_custom_call.1} parent=51 // pred_region
          %388 = dma.done %s381, 64
        $region56: #{tpu_custom_call.1} parent=51 // pred_fallthru
          _
        %s389 = sand.u32 %s35, 1
        %s390 = scalar_lea.sflag [#allocation6], %s389
        %s391 = sand.u32 %s69, 1
        %s392 = smul.addr %s391, 4
        %s393 = scalar_lea.vmem [#allocation5], %s392
        // Predicated region
        $region57: #{tpu_custom_call.1} parent=51 // pred_check
          %p394 = pneg %p82
        $region58: #{tpu_custom_call.1} parent=51 // pred_check_branch
          %396 = sbr.rel (%p394) target = $region60
        $region59: #{tpu_custom_call.1} parent=51 // pred_region
          %397 = dma.done %s390, 64
        $region60: #{tpu_custom_call.1} parent=51 // pred_fallthru
          _
        // Predicated region
        $region61: #{tpu_custom_call.1} parent=51 // pred_check
          %p398 = pneg %p103
        $region62: #{tpu_custom_call.1} parent=51 // pred_check_branch
          %400 = sbr.rel (%p398) target = $region64
        $region63: #{tpu_custom_call.1} parent=51 // pred_region
          %401 = dma.done [#allocation6], 1024
        $region64: #{tpu_custom_call.1} parent=51 // pred_fallthru
          _
        // Predicated region
        $region65: #{tpu_custom_call.1} parent=51 // pred_check
          %p402 = pneg %p124
        $region66: #{tpu_custom_call.1} parent=51 // pred_check_branch
          %404 = sbr.rel (%p402) target = $region68
        $region67: #{tpu_custom_call.1} parent=51 // pred_region
          %405 = dma.done [#allocation9], 1024
        $region68: #{tpu_custom_call.1} parent=51 // pred_fallthru
          _
        // Predicated region
        $region69: #{tpu_custom_call.1} parent=51 // pred_check
          %p406 = pneg %p145
        $region70: #{tpu_custom_call.1} parent=51 // pred_check_branch
          %408 = sbr.rel (%p406) target = $region72
        $region71: #{tpu_custom_call.1} parent=51 // pred_region
          %409 = dma.done [#allocation9], 1024
        $region72: #{tpu_custom_call.1} parent=51 // pred_fallthru
          _
        // Predicated region
        $region73: #{tpu_custom_call.1} parent=51 // pred_check
          %p410 = pneg %p166
        $region74: #{tpu_custom_call.1} parent=51 // pred_check_branch
          %412 = sbr.rel (%p410) target = $region76
        $region75: #{tpu_custom_call.1} parent=51 // pred_region
          %413 = dma.done [#allocation12], 1024
        $region76: #{tpu_custom_call.1} parent=51 // pred_fallthru
          _
        %s414 = sand.u32 %s43, 1
        %s415 = scalar_lea.sflag [#allocation3], %s414
        %s416 = sand.u32 %s43, 1
        %s417 = smul.addr %s416, 4
        %s418 = scalar_lea.vmem [#allocation2], %s417
        %p419 = pneg %p56
        %p420 = pneg %p53
        %s421 = sand.u32 %s35, 1
        %s422 = scalar_lea.sflag [#allocation6], %s421
        %s423 = sand.u32 %s69, 1
        %s424 = smul.addr %s423, 4
        %s425 = scalar_lea.vmem [#allocation5], %s424
        %p426 = pneg %p82
        %p427 = pneg %p79
        %p428 = pneg %p103
        %p429 = pneg %p100
        %p430 = pneg %p124
        %p431 = pneg %p121
        %p432 = pneg %p145
        %p433 = pneg %p142
        %p434 = pneg %p166
        %p435 = pneg %p163
        %p436 = pneg %p187
        %p437 = pneg %p184
        %p438 = pneg %p208
        %p439 = pneg %p205
        %p440 = pneg %p234
        %p441 = pneg %p231
        %s442 = sand.u32 %s221, 1
        %s443 = scalar_lea.sflag [#allocation4], %s442
        %s444 = sand.u32 %s221, 1
        %s445 = smul.addr %s444, 8
        %s446 = scalar_lea.vmem [#allocation13], %s445
        %p447 = pneg %p260
        %p448 = pneg %p257
        %s449 = sand.u32 %s247, 1
        %s450 = scalar_lea.sflag [#allocation15], %s449
        %s451 = sand.u32 %s247, 1
        %s452 = smul.addr %s451, 8
        %s453 = scalar_lea.vmem [#allocation14], %s452
        %v455 = vld [vmem:[%s384] sm:$0xf]
        %v456 = vld [vmem:[#allocation7] sm:$0xf]
        %v457 = vld [vmem:[#allocation7 + $0x4] sm:$0xf]
        %v458 = vld [vmem:[#allocation7 + $0x8] sm:$0xf]
        %v459 = vld [vmem:[#allocation7 + $0xc] sm:$0xf]
        %v460 = vld [vmem:[#allocation7 + $0x10] sm:$0xf]
        %v461 = vld [vmem:[#allocation7 + $0x14] sm:$0xf]
        %v462 = vld [vmem:[#allocation7 + $0x18] sm:$0xf]
        %v463 = vld [vmem:[#allocation7 + $0x1c] sm:$0xf]
        %v464 = vld [vmem:[#allocation7 + $0x20] sm:$0xf]
        %v465 = vld [vmem:[#allocation7 + $0x24] sm:$0xf]
        %v466 = vld [vmem:[#allocation7 + $0x28] sm:$0xf]
        %v467 = vld [vmem:[#allocation7 + $0x2c] sm:$0xf]
        %v468 = vld [vmem:[#allocation7 + $0x30] sm:$0xf]
        %v469 = vld [vmem:[#allocation7 + $0x34] sm:$0xf]
        %v470 = vld [vmem:[#allocation7 + $0x38] sm:$0xf]
        %v471 = vld [vmem:[#allocation7 + $0x3c] sm:$0xf]
        %v472 = vld [vmem:[%s6] sm:$0x1]
        %v474 = vlaneseq
        %v475 = vshrl.u32 %v474, 7
        %v476 = vsub.s32 0, %v475
        %v477 = vrot.slane %v472, %v476
        %v495 = vunpack.c.l.b16 %v456
        %v496 = vunpack.c.l.b16 %v457
        %v497 = vunpack.c.l.b16 %v458
        %v498 = vunpack.c.l.b16 %v459
        %v499 = vunpack.c.l.b16 %v460
        %v500 = vunpack.c.l.b16 %v461
        %v501 = vunpack.c.l.b16 %v462
        %v502 = vunpack.c.l.b16 %v463
        %v503 = vunpack.c.l.b16 %v464
        %v504 = vunpack.c.l.b16 %v465
        %v505 = vunpack.c.l.b16 %v466
        %v506 = vunpack.c.l.b16 %v467
        %v507 = vunpack.c.l.b16 %v468
        %v508 = vunpack.c.l.b16 %v469
        %v509 = vunpack.c.l.b16 %v470
        %v510 = vunpack.c.l.b16 %v471
        %v511 = vpack.c.b16 %v496, %v495
        %v512 = vpack.c.b16 %v498, %v497
        %v513 = vpack.c.b16 %v500, %v499
        %v514 = vpack.c.b16 %v502, %v501
        %v515 = vpack.c.b16 %v504, %v503
        %v516 = vpack.c.b16 %v506, %v505
        %v517 = vpack.c.b16 %v508, %v507
        %v518 = vpack.c.b16 %v510, %v509
        %527 = vmatprep.subr.bf16.mxu0 0
        %528 = vmatpush1.bf16.msra.mxu0 %v511
        %529 = vmatprep.subr.bf16.mxu0 0
        %530 = vmatpush1.bf16.msra.mxu0 %v512
        %531 = vmatprep.subr.bf16.mxu0 0
        %532 = vmatpush1.bf16.msra.mxu0 %v513
        %533 = vmatprep.subr.bf16.mxu0 0
        %534 = vmatpush1.bf16.msra.mxu0 %v514
        %535 = vmatprep.subr.bf16.mxu0 0
        %536 = vmatpush1.bf16.msra.mxu0 %v515
        %537 = vmatprep.subr.bf16.mxu0 0
        %538 = vmatpush1.bf16.msra.mxu0 %v516
        %539 = vmatprep.subr.bf16.mxu0 0
        %540 = vmatpush1.bf16.msra.mxu0 %v517
        %541 = vmatprep.subr.bf16.mxu0 0
        %542 = vmatpush1.bf16.msra.mxu0 %v518
        %543 = vmatprep.subr.bf16.mxu0 0
        %544 = vmatpush1.bf16.msra.mxu0 0
        %545 = vmatprep.subr.bf16.mxu0 0
        %546 = vmatpush1.bf16.msra.mxu0 0
        %547 = vmatprep.subr.bf16.mxu0 0
        %548 = vmatpush1.bf16.msra.mxu0 0
        %549 = vmatprep.subr.bf16.mxu0 0
        %550 = vmatpush1.bf16.msra.mxu0 0
        %551 = vmatprep.subr.bf16.mxu0 0
        %552 = vmatpush1.bf16.msra.mxu0 0
        %553 = vmatprep.subr.bf16.mxu0 0
        %554 = vmatpush1.bf16.msra.mxu0 0
        %555 = vmatprep.subr.bf16.mxu0 0
        %556 = vmatpush1.bf16.msra.mxu0 0
        %557 = vmatprep.subr.bf16.mxu0 0
        %558 = vmatpush1.bf16.msra.mxu0 0
        %559 = vmatprep.mubr.bf16.mxu0 0
        %560 = vmatmul.mubr.bf16.gmra.mrb[0].mxu0 %v455
        %v561 = vpop.f32.mrb[0].mxu0
        %v562 = vadd.f32 %v477, %v561
        %v563 = vpop.f32.mrb[0].mxu0
        %v564 = vpop.f32.mrb[0].mxu0
        %v565 = vpop.f32.mrb[0].mxu0
        %566 = vdwg.mxu0
        %567 = vmax.xlane.f32.xlu0 %v562
        %v568 = vpop.xlane.xlu0 %567
        %v569 = vsub.f32 %v562, %v568
        %v570 = vmul.f32 %v569, 1.442695
        %v571 = vpow.pop %v570
        %572 = vadd.xlane.f32.xlu0 %v571
        %v573 = vpop.xlane.xlu0 %572
        %v574 = vpack.c.bf16 %v571, %v571
        %v575 = vld [vmem:[#allocation10] sm:$0xf]
        %v576 = vld [vmem:[#allocation10 + $0x4] sm:$0xf]
        %v577 = vld [vmem:[#allocation10 + $0x8] sm:$0xf]
        %v578 = vld [vmem:[#allocation10 + $0xc] sm:$0xf]
        %v579 = vld [vmem:[#allocation10 + $0x10] sm:$0xf]
        %v580 = vld [vmem:[#allocation10 + $0x14] sm:$0xf]
        %v581 = vld [vmem:[#allocation10 + $0x18] sm:$0xf]
        %v582 = vld [vmem:[#allocation10 + $0x1c] sm:$0xf]
        %v583 = vld [vmem:[#allocation10 + $0x20] sm:$0xf]
        %v584 = vld [vmem:[#allocation10 + $0x24] sm:$0xf]
        %v585 = vld [vmem:[#allocation10 + $0x28] sm:$0xf]
        %v586 = vld [vmem:[#allocation10 + $0x2c] sm:$0xf]
        %v587 = vld [vmem:[#allocation10 + $0x30] sm:$0xf]
        %v588 = vld [vmem:[#allocation10 + $0x34] sm:$0xf]
        %v589 = vld [vmem:[#allocation10 + $0x38] sm:$0xf]
        %v590 = vld [vmem:[#allocation10 + $0x3c] sm:$0xf]
        %v607 = vunpack.c.l.b16 %v575
        %v608 = vunpack.c.l.b16 %v576
        %v609 = vunpack.c.l.b16 %v577
        %v610 = vunpack.c.l.b16 %v578
        %v611 = vunpack.c.l.b16 %v579
        %v612 = vunpack.c.l.b16 %v580
        %v613 = vunpack.c.l.b16 %v581
        %v614 = vunpack.c.l.b16 %v582
        %v615 = vunpack.c.l.b16 %v583
        %v616 = vunpack.c.l.b16 %v584
        %v617 = vunpack.c.l.b16 %v585
        %v618 = vunpack.c.l.b16 %v586
        %v619 = vunpack.c.l.b16 %v587
        %v620 = vunpack.c.l.b16 %v588
        %v621 = vunpack.c.l.b16 %v589
        %v622 = vunpack.c.l.b16 %v590
        %v623 = vpack.c.b16 %v608, %v607
        %v624 = vpack.c.b16 %v610, %v609
        %v625 = vpack.c.b16 %v612, %v611
        %v626 = vpack.c.b16 %v614, %v613
        %v627 = vpack.c.b16 %v616, %v615
        %v628 = vpack.c.b16 %v618, %v617
        %v629 = vpack.c.b16 %v620, %v619
        %v630 = vpack.c.b16 %v622, %v621
        %639 = vmatprep.subr.bf16.mxu0 0
        %640 = vmatpush1.bf16.msra.mxu0 %v623
        %641 = vmatprep.subr.bf16.mxu0 0
        %642 = vmatpush1.bf16.msra.mxu0 %v624
        %643 = vmatprep.subr.bf16.mxu0 0
        %644 = vmatpush1.bf16.msra.mxu0 %v625
        %645 = vmatprep.subr.bf16.mxu0 0
        %646 = vmatpush1.bf16.msra.mxu0 %v626
        %647 = vmatprep.subr.bf16.mxu0 0
        %648 = vmatpush1.bf16.msra.mxu0 %v627
        %649 = vmatprep.subr.bf16.mxu0 0
        %650 = vmatpush1.bf16.msra.mxu0 %v628
        %651 = vmatprep.subr.bf16.mxu0 0
        %652 = vmatpush1.bf16.msra.mxu0 %v629
        %653 = vmatprep.subr.bf16.mxu0 0
        %654 = vmatpush1.bf16.msra.mxu0 %v630
        %655 = vmatprep.subr.bf16.mxu0 0
        %656 = vmatpush1.bf16.msra.mxu0 0
        %657 = vmatprep.subr.bf16.mxu0 0
        %658 = vmatpush1.bf16.msra.mxu0 0
        %659 = vmatprep.subr.bf16.mxu0 0
        %660 = vmatpush1.bf16.msra.mxu0 0
        %661 = vmatprep.subr.bf16.mxu0 0
        %662 = vmatpush1.bf16.msra.mxu0 0
        %663 = vmatprep.subr.bf16.mxu0 0
        %664 = vmatpush1.bf16.msra.mxu0 0
        %665 = vmatprep.subr.bf16.mxu0 0
        %666 = vmatpush1.bf16.msra.mxu0 0
        %667 = vmatprep.subr.bf16.mxu0 0
        %668 = vmatpush1.bf16.msra.mxu0 0
        %669 = vmatprep.subr.bf16.mxu0 0
        %670 = vmatpush1.bf16.msra.mxu0 0
        %671 = vmatprep.mubr.bf16.mxu0 0
        %672 = vmatmul.mubr.bf16.gmra.mrb[0].mxu0 %v574
        %v673 = vpop.f32.mrb[0].mxu0
        %v674 = vadd.f32 0.0, %v673
        %v675 = vpop.f32.mrb[0].mxu0
        %v676 = vpop.f32.mrb[0].mxu0
        %v677 = vpop.f32.mrb[0].mxu0
        %678 = vdwg.mxu0
        %v679 = vrcp.pop %v573
        %v680 = vmul.f32 %v674, %v679
        %681 = vst [vmem:[%s446] sm:$0xff] %v680
        %v682 = vld [vmem:[%s393] sm:$0xf]
        %v683 = vld [vmem:[#allocation8] sm:$0xf]
        %v684 = vld [vmem:[#allocation8 + $0x4] sm:$0xf]
        %v685 = vld [vmem:[#allocation8 + $0x8] sm:$0xf]
        %v686 = vld [vmem:[#allocation8 + $0xc] sm:$0xf]
        %v687 = vld [vmem:[#allocation8 + $0x10] sm:$0xf]
        %v688 = vld [vmem:[#allocation8 + $0x14] sm:$0xf]
        %v689 = vld [vmem:[#allocation8 + $0x18] sm:$0xf]
        %v690 = vld [vmem:[#allocation8 + $0x1c] sm:$0xf]
        %v691 = vld [vmem:[#allocation8 + $0x20] sm:$0xf]
        %v692 = vld [vmem:[#allocation8 + $0x24] sm:$0xf]
        %v693 = vld [vmem:[#allocation8 + $0x28] sm:$0xf]
        %v694 = vld [vmem:[#allocation8 + $0x2c] sm:$0xf]
        %v695 = vld [vmem:[#allocation8 + $0x30] sm:$0xf]
        %v696 = vld [vmem:[#allocation8 + $0x34] sm:$0xf]
        %v697 = vld [vmem:[#allocation8 + $0x38] sm:$0xf]
        %v698 = vld [vmem:[#allocation8 + $0x3c] sm:$0xf]
        %v699 = vld [vmem:[%s7] sm:$0x1]
        %v701 = vlaneseq
        %v702 = vshrl.u32 %v701, 7
        %v703 = vsub.s32 0, %v702
        %v704 = vrot.slane %v699, %v703
        %v722 = vunpack.c.l.b16 %v683
        %v723 = vunpack.c.l.b16 %v684
        %v724 = vunpack.c.l.b16 %v685
        %v725 = vunpack.c.l.b16 %v686
        %v726 = vunpack.c.l.b16 %v687
        %v727 = vunpack.c.l.b16 %v688
        %v728 = vunpack.c.l.b16 %v689
        %v729 = vunpack.c.l.b16 %v690
        %v730 = vunpack.c.l.b16 %v691
        %v731 = vunpack.c.l.b16 %v692
        %v732 = vunpack.c.l.b16 %v693
        %v733 = vunpack.c.l.b16 %v694
        %v734 = vunpack.c.l.b16 %v695
        %v735 = vunpack.c.l.b16 %v696
        %v736 = vunpack.c.l.b16 %v697
        %v737 = vunpack.c.l.b16 %v698
        %v738 = vpack.c.b16 %v723, %v722
        %v739 = vpack.c.b16 %v725, %v724
        %v740 = vpack.c.b16 %v727, %v726
        %v741 = vpack.c.b16 %v729, %v728
        %v742 = vpack.c.b16 %v731, %v730
        %v743 = vpack.c.b16 %v733, %v732
        %v744 = vpack.c.b16 %v735, %v734
        %v745 = vpack.c.b16 %v737, %v736
        %754 = vmatprep.subr.bf16.mxu0 0
        %755 = vmatpush1.bf16.msra.mxu0 %v738
        %756 = vmatprep.subr.bf16.mxu0 0
        %757 = vmatpush1.bf16.msra.mxu0 %v739
        %758 = vmatprep.subr.bf16.mxu0 0
        %759 = vmatpush1.bf16.msra.mxu0 %v740
        %760 = vmatprep.subr.bf16.mxu0 0
        %761 = vmatpush1.bf16.msra.mxu0 %v741
        %762 = vmatprep.subr.bf16.mxu0 0
        %763 = vmatpush1.bf16.msra.mxu0 %v742
        %764 = vmatprep.subr.bf16.mxu0 0
        %765 = vmatpush1.bf16.msra.mxu0 %v743
        %766 = vmatprep.subr.bf16.mxu0 0
        %767 = vmatpush1.bf16.msra.mxu0 %v744
        %768 = vmatprep.subr.bf16.mxu0 0
        %769 = vmatpush1.bf16.msra.mxu0 %v745
        %770 = vmatprep.subr.bf16.mxu0 0
        %771 = vmatpush1.bf16.msra.mxu0 0
        %772 = vmatprep.subr.bf16.mxu0 0
        %773 = vmatpush1.bf16.msra.mxu0 0
        %774 = vmatprep.subr.bf16.mxu0 0
        %775 = vmatpush1.bf16.msra.mxu0 0
        %776 = vmatprep.subr.bf16.mxu0 0
        %777 = vmatpush1.bf16.msra.mxu0 0
        %778 = vmatprep.subr.bf16.mxu0 0
        %779 = vmatpush1.bf16.msra.mxu0 0
        %780 = vmatprep.subr.bf16.mxu0 0
        %781 = vmatpush1.bf16.msra.mxu0 0
        %782 = vmatprep.subr.bf16.mxu0 0
        %783 = vmatpush1.bf16.msra.mxu0 0
        %784 = vmatprep.subr.bf16.mxu0 0
        %785 = vmatpush1.bf16.msra.mxu0 0
        %786 = vmatprep.mubr.bf16.mxu0 0
        %787 = vmatmul.mubr.bf16.gmra.mrb[0].mxu0 %v682
        %v788 = vpop.f32.mrb[0].mxu0
        %v789 = vadd.f32 %v704, %v788
        %v790 = vpop.f32.mrb[0].mxu0
        %v791 = vpop.f32.mrb[0].mxu0
        %v792 = vpop.f32.mrb[0].mxu0
        %793 = vdwg.mxu0
        %794 = vmax.xlane.f32.xlu0 %v789
        %v795 = vpop.xlane.xlu0 %794
        %v796 = vsub.f32 %v789, %v795
        %v797 = vmul.f32 %v796, 1.442695
        %v798 = vpow.pop %v797
        %799 = vadd.xlane.f32.xlu0 %v798
        %v800 = vpop.xlane.xlu0 %799
        %v801 = vpack.c.bf16 %v798, %v798
        %v802 = vld [vmem:[#allocation11] sm:$0xf]
        %v803 = vld [vmem:[#allocation11 + $0x4] sm:$0xf]
        %v804 = vld [vmem:[#allocation11 + $0x8] sm:$0xf]
        %v805 = vld [vmem:[#allocation11 + $0xc] sm:$0xf]
        %v806 = vld [vmem:[#allocation11 + $0x10] sm:$0xf]
        %v807 = vld [vmem:[#allocation11 + $0x14] sm:$0xf]
        %v808 = vld [vmem:[#allocation11 + $0x18] sm:$0xf]
        %v809 = vld [vmem:[#allocation11 + $0x1c] sm:$0xf]
        %v810 = vld [vmem:[#allocation11 + $0x20] sm:$0xf]
        %v811 = vld [vmem:[#allocation11 + $0x24] sm:$0xf]
        %v812 = vld [vmem:[#allocation11 + $0x28] sm:$0xf]
        %v813 = vld [vmem:[#allocation11 + $0x2c] sm:$0xf]
        %v814 = vld [vmem:[#allocation11 + $0x30] sm:$0xf]
        %v815 = vld [vmem:[#allocation11 + $0x34] sm:$0xf]
        %v816 = vld [vmem:[#allocation11 + $0x38] sm:$0xf]
        %v817 = vld [vmem:[#allocation11 + $0x3c] sm:$0xf]
        %v834 = vunpack.c.l.b16 %v802
        %v835 = vunpack.c.l.b16 %v803
        %v836 = vunpack.c.l.b16 %v804
        %v837 = vunpack.c.l.b16 %v805
        %v838 = vunpack.c.l.b16 %v806
        %v839 = vunpack.c.l.b16 %v807
        %v840 = vunpack.c.l.b16 %v808
        %v841 = vunpack.c.l.b16 %v809
        %v842 = vunpack.c.l.b16 %v810
        %v843 = vunpack.c.l.b16 %v811
        %v844 = vunpack.c.l.b16 %v812
        %v845 = vunpack.c.l.b16 %v813
        %v846 = vunpack.c.l.b16 %v814
        %v847 = vunpack.c.l.b16 %v815
        %v848 = vunpack.c.l.b16 %v816
        %v849 = vunpack.c.l.b16 %v817
        %v850 = vpack.c.b16 %v835, %v834
        %v851 = vpack.c.b16 %v837, %v836
        %v852 = vpack.c.b16 %v839, %v838
        %v853 = vpack.c.b16 %v841, %v840
        %v854 = vpack.c.b16 %v843, %v842
        %v855 = vpack.c.b16 %v845, %v844
        %v856 = vpack.c.b16 %v847, %v846
        %v857 = vpack.c.b16 %v849, %v848
        %866 = vmatprep.subr.bf16.mxu0 0
        %867 = vmatpush1.bf16.msra.mxu0 %v850
        %868 = vmatprep.subr.bf16.mxu0 0
        %869 = vmatpush1.bf16.msra.mxu0 %v851
        %870 = vmatprep.subr.bf16.mxu0 0
        %871 = vmatpush1.bf16.msra.mxu0 %v852
        %872 = vmatprep.subr.bf16.mxu0 0
        %873 = vmatpush1.bf16.msra.mxu0 %v853
        %874 = vmatprep.subr.bf16.mxu0 0
        %875 = vmatpush1.bf16.msra.mxu0 %v854
        %876 = vmatprep.subr.bf16.mxu0 0
        %877 = vmatpush1.bf16.msra.mxu0 %v855
        %878 = vmatprep.subr.bf16.mxu0 0
        %879 = vmatpush1.bf16.msra.mxu0 %v856
        %880 = vmatprep.subr.bf16.mxu0 0
        %881 = vmatpush1.bf16.msra.mxu0 %v857
        %882 = vmatprep.subr.bf16.mxu0 0
        %883 = vmatpush1.bf16.msra.mxu0 0
        %884 = vmatprep.subr.bf16.mxu0 0
        %885 = vmatpush1.bf16.msra.mxu0 0
        %886 = vmatprep.subr.bf16.mxu0 0
        %887 = vmatpush1.bf16.msra.mxu0 0
        %888 = vmatprep.subr.bf16.mxu0 0
        %889 = vmatpush1.bf16.msra.mxu0 0
        %890 = vmatprep.subr.bf16.mxu0 0
        %891 = vmatpush1.bf16.msra.mxu0 0
        %892 = vmatprep.subr.bf16.mxu0 0
        %893 = vmatpush1.bf16.msra.mxu0 0
        %894 = vmatprep.subr.bf16.mxu0 0
        %895 = vmatpush1.bf16.msra.mxu0 0
        %896 = vmatprep.subr.bf16.mxu0 0
        %897 = vmatpush1.bf16.msra.mxu0 0
        %898 = vmatprep.mubr.bf16.mxu0 0
        %899 = vmatmul.mubr.bf16.gmra.mrb[0].mxu0 %v801
        %v900 = vpop.f32.mrb[0].mxu0
        %v901 = vadd.f32 0.0, %v900
        %v902 = vpop.f32.mrb[0].mxu0
        %v903 = vpop.f32.mrb[0].mxu0
        %v904 = vpop.f32.mrb[0].mxu0
        %905 = vdwg.mxu0
        %v906 = vrcp.pop %v800
        %v907 = vmul.f32 %v901, %v906
        %908 = vst [vmem:[%s453] sm:$0xff] %v907
        %s909 = sand.u32 %s221, 1
        %s910 = scalar_lea.sflag [#allocation4], %s909
        %s911 = sand.u32 %s221, 1
        %s912 = smul.addr %s911, 8
        %s913 = scalar_lea.vmem [#allocation13], %s912
        %s914 = sand.u32 %s247, 1
        %s915 = scalar_lea.sflag [#allocation15], %s914
        %s916 = sand.u32 %s247, 1
        %s917 = smul.addr %s916, 8
        %s918 = scalar_lea.vmem [#allocation14], %s917
        // Predicated region
        $region77: #{tpu_custom_call.1} parent=51 // pred_check
          %p919 = pneg %p231
        $region78: #{tpu_custom_call.1} parent=51 // pred_check_branch
          %921 = sbr.rel (%p919) target = $region80
        $region79: #{tpu_custom_call.1} parent=51 // pred_region
          %s923 = ssub.s32 128, 128
          %924 = vsyncadd %s910, %s923
          %s925 = smul.addr %s35, 128
          %s926 = scalar_lea.hbm %s8, %s925
          %s928 = sshll.u32 %s913, 4
          %s929 = int_to_ptr.vmem [resolvable:$true] %s928
          %931 = dma.vmem_to_hbm [thread:$0]  %s929, 128, %s926, %s910
        $region80: #{tpu_custom_call.1} parent=51 // pred_fallthru
          _
        // Predicated region
        $region81: #{tpu_custom_call.1} parent=51 // pred_check
          %p932 = pneg %p257
        $region82: #{tpu_custom_call.1} parent=51 // pred_check_branch
          %934 = sbr.rel (%p932) target = $region84
        $region83: #{tpu_custom_call.1} parent=51 // pred_region
          %s936 = ssub.s32 128, 128
          %937 = vsyncadd %s915, %s936
          %s938 = smul.addr %s35, 128
          %s939 = scalar_lea.hbm %s9, %s938
          %s941 = sshll.u32 %s918, 4
          %s942 = int_to_ptr.vmem [resolvable:$true] %s941
          %944 = dma.vmem_to_hbm [thread:$0]  %s942, 128, %s939, %s915
        $region84: #{tpu_custom_call.1} parent=51 // pred_fallthru
          _
      $region52: #{tpu_custom_call.1} parent=5 // pred_fallthru
        _
      %p945 = scmp.le.s32.totalorder 2, %s30
      // Predicated region
      $region85: #{tpu_custom_call.1} parent=5 // pred_check
        %p946 = pneg %p945
      $region86: #{tpu_custom_call.1} parent=5 // pred_check_branch
        %948 = sbr.rel (%p946) target = $region88
      $region87: #{tpu_custom_call.1} parent=5 // pred_region
        %s949 = ssub.s32 %s30, 2
        // Predicated region
        $region89: #{tpu_custom_call.1} parent=87 // pred_check
          %p950 = pneg %p237
        $region90: #{tpu_custom_call.1} parent=87 // pred_check_branch
          %952 = sbr.rel (%p950) target = $region92
        $region91: #{tpu_custom_call.1} parent=87 // pred_region
          %s953 = sand.u32 %s222, 1
          %s954 = scalar_lea.sflag [#allocation4], %s953
          %s955 = sand.u32 %s222, 1
          %s956 = smul.addr %s955, 8
          %s957 = scalar_lea.vmem [#allocation13], %s956
          %958 = dma.done %s954, 128
        $region92: #{tpu_custom_call.1} parent=87 // pred_fallthru
          _
        // Predicated region
        $region93: #{tpu_custom_call.1} parent=87 // pred_check
          %p959 = pneg %p263
        $region94: #{tpu_custom_call.1} parent=87 // pred_check_branch
          %961 = sbr.rel (%p959) target = $region96
        $region95: #{tpu_custom_call.1} parent=87 // pred_region
          %s962 = sand.u32 %s248, 1
          %s963 = scalar_lea.sflag [#allocation15], %s962
          %s964 = sand.u32 %s248, 1
          %s965 = smul.addr %s964, 8
          %s966 = scalar_lea.vmem [#allocation14], %s965
          %967 = dma.done %s963, 128
        $region96: #{tpu_custom_call.1} parent=87 // pred_fallthru
          _
      $region88: #{tpu_custom_call.1} parent=5 // pred_fallthru
        _
    $region6: #{tpu_custom_call.1} parent=1 // loop_footer
      %s34 = sadd.s32 1, %s30
    $region7: #{tpu_custom_call.1} parent=1 // loop_footer_branch
      %29 = sbr.rel target = $region3
    $region8: #{tpu_custom_call.1} parent=1 // loop_exit
      _
    %968 = vsyncpa [#allocation3], 1
    %s969 = scalar_lea.sflag [#allocation3], 1
    %970 = vsyncpa %s969, 1
    %971 = vsyncpa [#allocation6], 1
    %s972 = scalar_lea.sflag [#allocation6], 1
    %973 = vsyncpa %s972, 1
    %974 = vsyncpa [#allocation9], 1
    %975 = vsyncpa [#allocation12], 1
    %976 = vsyncpa [#allocation4], 1
    %s977 = scalar_lea.sflag [#allocation4], 1
    %978 = vsyncpa %s977, 1
    %979 = vsyncpa [#allocation15], 1
    %s980 = scalar_lea.sflag [#allocation15], 1
    %981 = vsyncpa %s980, 1

</llo_original>
